<compile_context>
chip_gen: v5e
topology: v5e:2x2
jax: 0.10.0
libtpu: 0.0.40
codegen_flags: <defaults>
</compile_context>

<pallas_src>
import functools

import jax
import jax.numpy as jnp
from jax import lax
from jax.experimental import pallas as pl
from jax.experimental.pallas import tpu as pltpu


# ------------------------------ tiling helpers ------------------------------

def _row_tile(m, target=512):
    """Largest divisor of m that is a multiple of 16 and <= target (falls back to a multiple
    of 8, then to m itself)."""
    for mult in (16, 8):
        best = 0
        t = mult
        while t <= min(m, target):
            if m % t == 0:
                best = t
            t += mult
        if best:
            return best
    return m


def _head_tile(num_heads, head_dim, seq_len, attn_bytes=4, budget_bytes=24 << 20):
    """Heads batched per attention grid step.

    Legal tiles keep the lane-dense BlockSpecs valid: h*head_dim must be a multiple of 128,
    or h == num_heads (block covers the full last dim).  Among legal tiles, pick the largest
    whose per-step working set (double-buffered blocks + in-kernel intermediates) fits the
    VMEM budget.  Returns (h_tile, per-step byte estimate).
    """
    legal = [h for h in range(1, num_heads + 1)
             if num_heads % h == 0 and (h * head_dim) % 128 == 0]
    if num_heads not in legal:
        legal.append(num_heads)
    legal.sort()

    def need(h):
        hd = h * head_dim
        blocks = 2 * (3 * seq_len * hd * 2            # qkv input block (bf16), double-buffered
                      + seq_len * hd * 2              # out block (bf16)
                      + h * seq_len * seq_len * attn_bytes)   # attn output block
        interm = 6 * seq_len * seq_len * 4 + h * seq_len * head_dim * 4
        return blocks + interm

    fits = [h for h in legal if need(h) <= budget_bytes]
    # TODO(synk): if even the smallest legal tile overflows (very large N on v7x), tile the KV
    # axis flash-style with online-softmax scratch instead of a full (h, N, N) score slab.
    h = fits[-1] if fits else legal[0]
    return h, need(h)


# ------------------------------- Pallas kernels ------------------------------

def _qkv_kernel(x_ref, w_ref, o_ref):
    # x:(tm, C) f32 (cast to bf16 in-kernel), w:(C, 3C) bf16 (resident), o:(3, tm, C) bf16.
    c = o_ref.shape[2]
    y = jnp.dot(x_ref[...].astype(w_ref.dtype), w_ref[...],
                preferred_element_type=jnp.float32)           # (tm, 3C), full-K MXU matmul
    o_ref[0] = y[:, :c].astype(o_ref.dtype)                   # q
    o_ref[1] = y[:, c:2 * c].astype(o_ref.dtype)              # k
    o_ref[2] = y[:, 2 * c:].astype(o_ref.dtype)               # v


def _attn_kernel(qkv_ref, o_ref, a_ref):
    # qkv:(3, 1, N, ht*D) bf16;  o:(1, N, ht*D) bf16;  a:(1, ht, N, N) attn dtype.
    ht, n = a_ref.shape[1], a_ref.shape[2]
    d = qkv_ref.shape[-1] // ht
    scale = float(d) ** -0.5

    q = qkv_ref[0, 0]                                         # (N, ht*D)
    k = qkv_ref[1, 0]
    v = qkv_ref[2, 0]

    # Single 2-D causal mask shared by every head in the tile (strictly-upper = masked).
    row = lax.broadcasted_iota(jnp.int32, (n, n), 0)
    col = lax.broadcasted_iota(jnp.int32, (n, n), 1)
    causal = col > row
    neg = -jnp.finfo(jnp.float32).max

    outs = []
    for h in range(ht):                                       # unrolled; ht is VMEM-budgeted
        lo, hi = h * d, (h + 1) * d
        s = lax.dot_general(q[:, lo:hi], k[:, lo:hi],
                            (((1,), (1,)), ((), ())),         # q @ k^T, no explicit transpose
                            preferred_element_type=jnp.float32)
        s = jnp.where(causal, neg, s * scale)
        m = jnp.max(s, axis=-1, keepdims=True)
        e = jnp.exp(s - m)
        p = e / jnp.sum(e, axis=-1, keepdims=True)            # exact divide: attn is returned
        # TODO(synk): attn dropout (p=0.5) training mode not implemented -- eval identity.
        a_ref[0, h] = p.astype(a_ref.dtype)
        outs.append(jnp.dot(p.astype(v.dtype), v[:, lo:hi],
                            preferred_element_type=jnp.float32))

    # 'b h n d -> b n (h d)' folded into the store: heads concatenated along lanes.
    o_ref[0] = jnp.concatenate(outs, axis=-1).astype(o_ref.dtype)


def _proj_kernel(x_ref, w_ref, b_ref, o_ref):
    # Full-K (tm, C) x (C, C) matmul + bias; no head-reduction axis, no accumulator scratch.
    y = jnp.dot(x_ref[...], w_ref[...], preferred_element_type=jnp.float32)
    o_ref[...] = (y + b_ref[...]).astype(o_ref.dtype)


# -------------------------------- JAX wrapper --------------------------------

def self_attention_forward(x, params, num_heads, attn_dtype=jnp.float32):
    """Reproduces SelfAttention.forward (eval mode) for split_head=True, causal=True.

    Returns (out (B,N,C) f32, attn (B,H,N,N) attn_dtype).  attn_dtype=jnp.bfloat16 halves the
    dominant N^2 HBM writeback on v5e/v6e if exact-f32 attention parity is not required.
    """
    B, N, C = x.shape
    H = num_heads
    D = C // H
    M = B * N

    tm = _row_tile(M)
    h_tile, vmem_need = _head_tile(H, D, N, attn_bytes=jnp.dtype(attn_dtype).itemsize)
    n_hg = H // h_tile
    vmem_limit = int(min(64 << 20, max(32 << 20, 2 * vmem_need)))

    x2d = x.reshape(M, C)                                     # free reshape; cast is in-kernel

    # ---- 1. fused QKV projection (bias=False) -> lane-dense (3, M, C) bf16 slab ----
    qkv = pl.pallas_call(
        _qkv_kernel,
        grid=(M // tm,),
        in_specs=[
            pl.BlockSpec((tm, C), lambda m: (m, 0)),
            pl.BlockSpec((C, 3 * C), lambda m: (0, 0)),       # constant index: DMA'd once
        ],
        out_specs=pl.BlockSpec((3, tm, C), lambda m: (0, m, 0)),
        out_shape=jax.ShapeDtypeStruct((3, M, C), jnp.bfloat16),
        compiler_params=pltpu.CompilerParams(dimension_semantics=("parallel",)),
    )(x2d, params["w_fused"])

    qkv = qkv.reshape(3, B, N, C)                             # leading-dim reshape only (free)

    # ---- 2. causal attention: h_tile heads per step, lane-dense (N, h_tile*D) blocks ----
    out_bnc, attn = pl.pallas_call(
        _attn_kernel,
        grid=(B, n_hg),
        in_specs=[pl.BlockSpec((3, 1, N, h_tile * D), lambda b, hg: (0, b, 0, hg))],
        out_specs=(
            pl.BlockSpec((1, N, h_tile * D), lambda b, hg: (b, 0, hg)),
            pl.BlockSpec((1, h_tile, N, N), lambda b, hg: (b, hg, 0, 0)),
        ),
        out_shape=(
            jax.ShapeDtypeStruct((B, N, C), jnp.bfloat16),    # already in 'b n (h d)' layout
            jax.ShapeDtypeStruct((B, H, N, N), attn_dtype),
        ),
        compiler_params=pltpu.CompilerParams(
            dimension_semantics=("parallel", "parallel"),
            vmem_limit_bytes=vmem_limit),
    )(qkv)

    # ---- 3. output projection: one full-K (tm, C) x (C, C) matmul + bias per row tile ----
    out = pl.pallas_call(
        _proj_kernel,
        grid=(M // tm,),
        in_specs=[
            pl.BlockSpec((tm, C), lambda m: (m, 0)),
            pl.BlockSpec((C, C), lambda m: (0, 0)),
            pl.BlockSpec((1, C), lambda m: (0, 0)),
        ],
        out_specs=pl.BlockSpec((tm, C), lambda m: (m, 0)),
        out_shape=jax.ShapeDtypeStruct((M, C), jnp.float32),
        compiler_params=pltpu.CompilerParams(dimension_semantics=("parallel",)),
    )(out_bnc.reshape(M, C), params["w_proj"], params["b_proj"])

    # TODO(synk): resid_dropout (p=0.5) training mode not implemented -- eval-mode identity.
    return out.reshape(B, N, C), attn


# ------------------------------ pure-JAX reference ----------------------------

def _reference(x, w_fused, w_proj, b_proj, num_heads):
    B, N, C = x.shape
    D = C // num_heads
    q, k, v = jnp.split(x @ w_fused, 3, axis=-1)

    def split(t):
        return t.reshape(B, N, num_heads, D).transpose(0, 2, 1, 3)

    q, k, v = split(q), split(k), split(v)
    s = (q * (D ** -0.5)) @ jnp.swapaxes(k, -1, -2)
    causal = jnp.triu(jnp.ones((N, N), dtype=bool), 1)
    s = jnp.where(causal, -jnp.finfo(jnp.float32).max, s)
    attn = jax.nn.softmax(s, axis=-1)
    o = (attn @ v).transpose(0, 2, 1, 3).reshape(B, N, C)
    return o @ w_proj + b_proj, attn


# ------------------------------------ main ------------------------------------

if __name__ == "__main__":
    B, N, C, H = 2, 8, 32, 4          # batch, seq, hidden, heads (head_dim = 8)
    D = C // H

    key = jax.random.PRNGKey(0)
    k_x, k_wf, k_wp, k_bp = jax.random.split(key, 4)

    x = jax.random.normal(k_x, (B, N, C), dtype=jnp.float32)

    bound = 1.0 / (C ** 0.5)          # nn.Linear-style uniform init bounds
    # fused_proj.weight is (3C, C) in torch; stored transposed (C, 3C) for x @ W^T.
    w_fused_t = jax.random.uniform(k_wf, (C, 3 * C), jnp.float32, -bound, bound)
    # proj.weight is (C, C); stored transposed for x @ W^T.
    w_proj_t = jax.random.uniform(k_wp, (C, C), jnp.float32, -bound, bound)
    b_proj = jax.random.uniform(k_bp, (1, C), jnp.float32, -bound, bound)

    params = {
        "w_fused": w_fused_t.astype(jnp.bfloat16),
        "w_proj": w_proj_t.astype(jnp.bfloat16),
        "b_proj": b_proj,
    }

    fwd = jax.jit(functools.partial(self_attention_forward, num_heads=H))
    out, attn = fwd(x, params)
    jax.block_until_ready((out, attn))

    assert out.shape == (B, N, C)
    assert attn.shape == (B, H, N, N)
    assert bool(jnp.all(jnp.isfinite(out))) and bool(jnp.all(jnp.isfinite(attn)))

    out_ref, attn_ref = _reference(x, w_fused_t, w_proj_t, b_proj, H)
    assert bool(jnp.allclose(attn.astype(jnp.float32), attn_ref, atol=3e-2, rtol=3e-2))
    assert bool(jnp.allclose(out, out_ref, atol=5e-2, rtol=5e-2))

    print("KERNEL_OK")
</pallas_src>

<mosaic_0001>
module attributes {stable_mosaic.version = 11 : i64} {
  func.func @_proj_kernel(%arg0: i32, %arg1: memref<16x32xbf16, #tpu.memory_space<vmem>>, %arg2: memref<32x32xbf16, #tpu.memory_space<vmem>>, %arg3: memref<1x32xf32, #tpu.memory_space<vmem>>, %arg4: memref<16x32xf32, #tpu.memory_space<vmem>>) attributes {dimension_semantics = [#tpu.dimension_semantics<parallel>], iteration_bounds = array<i64: 1>, scalar_prefetch = 0 : i64, scratch_operands = 0 : i64, tpu.core_type = #tpu.core_type<tc>, window_params = [{transform_indices = @transform_0, window_bounds = array<i64: 16, 32>}, {pipeline_mode = #tpu.pipeline_mode<synchronous>, transform_indices = @transform_1, window_bounds = array<i64: 32, 32>}, {pipeline_mode = #tpu.pipeline_mode<synchronous>, transform_indices = @transform_2, window_bounds = array<i64: 1, 32>}, {transform_indices = @transform_3, window_bounds = array<i64: 16, 32>}]} {
    %c0 = arith.constant 0 : index
    %c0_0 = arith.constant 0 : index
    %0 = vector.load %arg1[%c0, %c0_0] : memref<16x32xbf16, #tpu.memory_space<vmem>>, vector<16x32xbf16>
    %c0_1 = arith.constant 0 : index
    %c0_2 = arith.constant 0 : index
    %1 = vector.load %arg2[%c0_1, %c0_2] : memref<32x32xbf16, #tpu.memory_space<vmem>>, vector<32x32xbf16>
    %cst = arith.constant dense<0.000000e+00> : vector<16x32xf32>
    %2 = tpu.matmul %0, %1, %cst {dimension_numbers = #tpu.dot_dimension_numbers<[1], [0], [0], [1], [0, 0, 1, 1], [], []>} : vector<16x32xbf16>, vector<32x32xbf16>, vector<16x32xf32> -> vector<16x32xf32>
    %c0_3 = arith.constant 0 : index
    %c0_4 = arith.constant 0 : index
    %3 = vector.load %arg3[%c0_3, %c0_4] : memref<1x32xf32, #tpu.memory_space<vmem>>, vector<1x32xf32>
    %4 = vector.broadcast %3 : vector<1x32xf32> to vector<16x32xf32>
    %5 = arith.addf %2, %4 : vector<16x32xf32>
    %c0_5 = arith.constant 0 : index
    %c0_6 = arith.constant 0 : index
    %6 = vector.load %arg4[%c0_5, %c0_6] : memref<16x32xf32, #tpu.memory_space<vmem>>, vector<16x32xf32>
    tpu.vector_store %arg4[%c0_5, %c0_6], %5 {strides = array<i32>} : memref<16x32xf32, #tpu.memory_space<vmem>>, vector<16x32xf32>,
    return
  }
  func.func @transform_0(%arg0: i32) -> (i32, i32) {
    %c0_i32 = arith.constant 0 : i32
    %c0_i32_0 = arith.constant 0 : i32
    return %arg0, %c0_i32 : i32, i32
  }
  func.func @transform_1(%arg0: i32) -> (i32, i32) {
    %c0_i32 = arith.constant 0 : i32
    %c0_i32_0 = arith.constant 0 : i32
    %c0_i32_1 = arith.constant 0 : i32
    return %c0_i32, %c0_i32_0 : i32, i32
  }
  func.func @transform_2(%arg0: i32) -> (i32, i32) {
    %c0_i32 = arith.constant 0 : i32
    %c0_i32_0 = arith.constant 0 : i32
    %c0_i32_1 = arith.constant 0 : i32
    return %c0_i32, %c0_i32_0 : i32, i32
  }
  func.func @transform_3(%arg0: i32) -> (i32, i32) {
    %c0_i32 = arith.constant 0 : i32
    %c0_i32_0 = arith.constant 0 : i32
    return %arg0, %c0_i32 : i32, i32
  }
}

module attributes {stable_mosaic.version = 11 : i64} {
  func.func @_qkv_kernel(%arg0: i32, %arg1: memref<16x32xf32, #tpu.memory_space<vmem>>, %arg2: memref<32x96xbf16, #tpu.memory_space<vmem>>, %arg3: memref<3x16x32xbf16, #tpu.memory_space<vmem>>) attributes {dimension_semantics = [#tpu.dimension_semantics<parallel>], iteration_bounds = array<i64: 1>, scalar_prefetch = 0 : i64, scratch_operands = 0 : i64, tpu.core_type = #tpu.core_type<tc>, window_params = [{transform_indices = @transform_0, window_bounds = array<i64: 16, 32>}, {pipeline_mode = #tpu.pipeline_mode<synchronous>, transform_indices = @transform_1, window_bounds = array<i64: 32, 96>}, {transform_indices = @transform_2, window_bounds = array<i64: 3, 16, 32>}]} {
    %c0 = arith.constant 0 : index
    %c0_0 = arith.constant 0 : index
    %0 = vector.load %arg1[%c0, %c0_0] : memref<16x32xf32, #tpu.memory_space<vmem>>, vector<16x32xf32>
    %1 = arith.truncf %0 : vector<16x32xf32> to vector<16x32xbf16>
    %c0_1 = arith.constant 0 : index
    %c0_2 = arith.constant 0 : index
    %2 = vector.load %arg2[%c0_1, %c0_2] : memref<32x96xbf16, #tpu.memory_space<vmem>>, vector<32x96xbf16>
    %cst = arith.constant dense<0.000000e+00> : vector<16x96xf32>
    %3 = tpu.matmul %1, %2, %cst {dimension_numbers = #tpu.dot_dimension_numbers<[1], [0], [0], [1], [0, 0, 1, 1], [], []>} : vector<16x32xbf16>, vector<32x96xbf16>, vector<16x96xf32> -> vector<16x96xf32>
    %4 = vector.extract_strided_slice %3 {offsets = [0, 0], sizes = [16, 32], strides = [1, 1]} : vector<16x96xf32> to vector<16x32xf32>
    %5 = arith.truncf %4 : vector<16x32xf32> to vector<16x32xbf16>
    %c0_3 = arith.constant 0 : index
    %c0_4 = arith.constant 0 : index
    %c0_5 = arith.constant 0 : index
    %6 = vector.load %arg3[%c0_3, %c0_4, %c0_5] : memref<3x16x32xbf16, #tpu.memory_space<vmem>>, vector<1x16x32xbf16>
    %7 = vector.shape_cast %6 : vector<1x16x32xbf16> to vector<16x32xbf16>
    %8 = vector.shape_cast %5 : vector<16x32xbf16> to vector<1x16x32xbf16>
    tpu.vector_store %arg3[%c0_3, %c0_4, %c0_5], %8 {strides = array<i32>} : memref<3x16x32xbf16, #tpu.memory_space<vmem>>, vector<1x16x32xbf16>,
    %9 = vector.extract_strided_slice %3 {offsets = [0, 32], sizes = [16, 32], strides = [1, 1]} : vector<16x96xf32> to vector<16x32xf32>
    %10 = arith.truncf %9 : vector<16x32xf32> to vector<16x32xbf16>
    %c1 = arith.constant 1 : index
    %c0_6 = arith.constant 0 : index
    %c0_7 = arith.constant 0 : index
    %11 = vector.load %arg3[%c1, %c0_6, %c0_7] : memref<3x16x32xbf16, #tpu.memory_space<vmem>>, vector<1x16x32xbf16>
    %12 = vector.shape_cast %11 : vector<1x16x32xbf16> to vector<16x32xbf16>
    %13 = vector.shape_cast %10 : vector<16x32xbf16> to vector<1x16x32xbf16>
    tpu.vector_store %arg3[%c1, %c0_6, %c0_7], %13 {strides = array<i32>} : memref<3x16x32xbf16, #tpu.memory_space<vmem>>, vector<1x16x32xbf16>,
    %14 = vector.extract_strided_slice %3 {offsets = [0, 64], sizes = [16, 32], strides = [1, 1]} : vector<16x96xf32> to vector<16x32xf32>
    %15 = arith.truncf %14 : vector<16x32xf32> to vector<16x32xbf16>
    %c2 = arith.constant 2 : index
    %c0_8 = arith.constant 0 : index
    %c0_9 = arith.constant 0 : index
    %16 = vector.load %arg3[%c2, %c0_8, %c0_9] : memref<3x16x32xbf16, #tpu.memory_space<vmem>>, vector<1x16x32xbf16>
    %17 = vector.shape_cast %16 : vector<1x16x32xbf16> to vector<16x32xbf16>
    %18 = vector.shape_cast %15 : vector<16x32xbf16> to vector<1x16x32xbf16>
    tpu.vector_store %arg3[%c2, %c0_8, %c0_9], %18 {strides = array<i32>} : memref<3x16x32xbf16, #tpu.memory_space<vmem>>, vector<1x16x32xbf16>,
    return
  }
  func.func @transform_0(%arg0: i32) -> (i32, i32) {
    %c0_i32 = arith.constant 0 : i32
    %c0_i32_0 = arith.constant 0 : i32
    return %arg0, %c0_i32 : i32, i32
  }
  func.func @transform_1(%arg0: i32) -> (i32, i32) {
    %c0_i32 = arith.constant 0 : i32
    %c0_i32_0 = arith.constant 0 : i32
    %c0_i32_1 = arith.constant 0 : i32
    return %c0_i32, %c0_i32_0 : i32, i32
  }
  func.func @transform_2(%arg0: i32) -> (i32, i32, i32) {
    %c0_i32 = arith.constant 0 : i32
    %c0_i32_0 = arith.constant 0 : i32
    %c0_i32_1 = arith.constant 0 : i32
    return %c0_i32, %arg0, %c0_i32_0 : i32, i32, i32
  }
}

module attributes {stable_mosaic.version = 11 : i64} {
  func.func @_attn_kernel(%arg0: i32, %arg1: i32, %arg2: memref<3x1x8x32xbf16, #tpu.memory_space<vmem>>, %arg3: memref<1x8x32xbf16, #tpu.memory_space<vmem>>, %arg4: memref<1x4x8x8xf32, #tpu.memory_space<vmem>>) attributes {dimension_semantics = [#tpu.dimension_semantics<parallel>, #tpu.dimension_semantics<parallel>], iteration_bounds = array<i64: 2, 1>, scalar_prefetch = 0 : i64, scratch_operands = 0 : i64, tpu.core_type = #tpu.core_type<tc>, window_params = [{transform_indices = @transform_0, window_bounds = array<i64: 3, 1, 8, 32>}, {transform_indices = @transform_1, window_bounds = array<i64: 1, 8, 32>}, {transform_indices = @transform_2, window_bounds = array<i64: 1, 4, 8, 8>}]} {
    %c0 = arith.constant 0 : index
    %c0_0 = arith.constant 0 : index
    %c0_1 = arith.constant 0 : index
    %c0_2 = arith.constant 0 : index
    %0 = vector.load %arg2[%c0, %c0_0, %c0_1, %c0_2] : memref<3x1x8x32xbf16, #tpu.memory_space<vmem>>, vector<1x1x8x32xbf16>
    %1 = vector.shape_cast %0 : vector<1x1x8x32xbf16> to vector<8x32xbf16>
    %c1 = arith.constant 1 : index
    %c0_3 = arith.constant 0 : index
    %c0_4 = arith.constant 0 : index
    %c0_5 = arith.constant 0 : index
    %2 = vector.load %arg2[%c1, %c0_3, %c0_4, %c0_5] : memref<3x1x8x32xbf16, #tpu.memory_space<vmem>>, vector<1x1x8x32xbf16>
    %3 = vector.shape_cast %2 : vector<1x1x8x32xbf16> to vector<8x32xbf16>
    %c2 = arith.constant 2 : index
    %c0_6 = arith.constant 0 : index
    %c0_7 = arith.constant 0 : index
    %c0_8 = arith.constant 0 : index
    %4 = vector.load %arg2[%c2, %c0_6, %c0_7, %c0_8] : memref<3x1x8x32xbf16, #tpu.memory_space<vmem>>, vector<1x1x8x32xbf16>
    %5 = vector.shape_cast %4 : vector<1x1x8x32xbf16> to vector<8x32xbf16>
    %6 = tpu.iota {dimensions = array<i32: 0>} : vector<8x8xi32>
    %7 = tpu.iota {dimensions = array<i32: 1>} : vector<8x8xi32>
    %8 = arith.cmpi sgt, %7, %6 : vector<8x8xi32>
    %9 = vector.extract_strided_slice %1 {offsets = [0, 0], sizes = [8, 8], strides = [1, 1]} : vector<8x32xbf16> to vector<8x8xbf16>
    %10 = vector.extract_strided_slice %3 {offsets = [0, 0], sizes = [8, 8], strides = [1, 1]} : vector<8x32xbf16> to vector<8x8xbf16>
    %cst = arith.constant dense<0.000000e+00> : vector<8x8xf32>
    %11 = tpu.matmul %9, %10, %cst {dimension_numbers = #tpu.dot_dimension_numbers<[1], [1], [0], [0], [0, 0, 1, 0], [], []>} : vector<8x8xbf16>, vector<8x8xbf16>, vector<8x8xf32> -> vector<8x8xf32>
    %cst_9 = arith.constant 0.353553385 : f32
    %12 = vector.broadcast %cst_9 : f32 to vector<8x8xf32>
    %13 = arith.mulf %11, %12 : vector<8x8xf32>
    %cst_10 = arith.constant -3.40282347E+38 : f32
    %14 = vector.broadcast %cst_10 : f32 to vector<8x8xf32>
    %15 = arith.select %8, %14, %13 : vector<8x8xi1>, vector<8x8xf32>
    %cst_11 = arith.constant dense<0xFF800000> : vector<8xf32>
    %16 = vector.multi_reduction <maximumf>, %15, %cst_11 [1] : vector<8x8xf32> to vector<8xf32>
    %17 = vector.shape_cast %16 : vector<8xf32> to vector<8x1xf32>
    %18 = vector.broadcast %17 : vector<8x1xf32> to vector<8x8xf32>
    %19 = arith.subf %15, %18 : vector<8x8xf32>
    %20 = math.exp %19 : vector<8x8xf32>
    %cst_12 = arith.constant dense<0.000000e+00> : vector<8xf32>
    %21 = vector.multi_reduction <add>, %20, %cst_12 [1] : vector<8x8xf32> to vector<8xf32>
    %22 = vector.shape_cast %21 : vector<8xf32> to vector<8x1xf32>
    %23 = vector.broadcast %22 : vector<8x1xf32> to vector<8x8xf32>
    %24 = arith.divf %20, %23 : vector<8x8xf32>
    %c0_13 = arith.constant 0 : index
    %c0_14 = arith.constant 0 : index
    %c0_15 = arith.constant 0 : index
    %c0_16 = arith.constant 0 : index
    %25 = vector.load %arg4[%c0_13, %c0_14, %c0_15, %c0_16] : memref<1x4x8x8xf32, #tpu.memory_space<vmem>>, vector<1x1x8x8xf32>
    %26 = vector.shape_cast %25 : vector<1x1x8x8xf32> to vector<8x8xf32>
    %27 = vector.shape_cast %24 : vector<8x8xf32> to vector<1x1x8x8xf32>
    tpu.vector_store %arg4[%c0_13, %c0_14, %c0_15, %c0_16], %27 {strides = array<i32>} : memref<1x4x8x8xf32, #tpu.memory_space<vmem>>, vector<1x1x8x8xf32>,
    %28 = arith.truncf %24 : vector<8x8xf32> to vector<8x8xbf16>
    %29 = vector.extract_strided_slice %5 {offsets = [0, 0], sizes = [8, 8], strides = [1, 1]} : vector<8x32xbf16> to vector<8x8xbf16>
    %cst_17 = arith.constant dense<0.000000e+00> : vector<8x8xf32>
    %30 = tpu.matmul %28, %29, %cst_17 {dimension_numbers = #tpu.dot_dimension_numbers<[1], [0], [0], [1], [0, 0, 1, 1], [], []>} : vector<8x8xbf16>, vector<8x8xbf16>, vector<8x8xf32> -> vector<8x8xf32>
    %31 = vector.extract_strided_slice %1 {offsets = [0, 8], sizes = [8, 8], strides = [1, 1]} : vector<8x32xbf16> to vector<8x8xbf16>
    %32 = vector.extract_strided_slice %3 {offsets = [0, 8], sizes = [8, 8], strides = [1, 1]} : vector<8x32xbf16> to vector<8x8xbf16>
    %cst_18 = arith.constant dense<0.000000e+00> : vector<8x8xf32>
    %33 = tpu.matmul %31, %32, %cst_18 {dimension_numbers = #tpu.dot_dimension_numbers<[1], [1], [0], [0], [0, 0, 1, 0], [], []>} : vector<8x8xbf16>, vector<8x8xbf16>, vector<8x8xf32> -> vector<8x8xf32>
    %cst_19 = arith.constant 0.353553385 : f32
    %34 = vector.broadcast %cst_19 : f32 to vector<8x8xf32>
    %35 = arith.mulf %33, %34 : vector<8x8xf32>
    %cst_20 = arith.constant -3.40282347E+38 : f32
    %36 = vector.broadcast %cst_20 : f32 to vector<8x8xf32>
    %37 = arith.select %8, %36, %35 : vector<8x8xi1>, vector<8x8xf32>
    %cst_21 = arith.constant dense<0xFF800000> : vector<8xf32>
    %38 = vector.multi_reduction <maximumf>, %37, %cst_21 [1] : vector<8x8xf32> to vector<8xf32>
    %39 = vector.shape_cast %38 : vector<8xf32> to vector<8x1xf32>
    %40 = vector.broadcast %39 : vector<8x1xf32> to vector<8x8xf32>
    %41 = arith.subf %37, %40 : vector<8x8xf32>
    %42 = math.exp %41 : vector<8x8xf32>
    %cst_22 = arith.constant dense<0.000000e+00> : vector<8xf32>
    %43 = vector.multi_reduction <add>, %42, %cst_22 [1] : vector<8x8xf32> to vector<8xf32>
    %44 = vector.shape_cast %43 : vector<8xf32> to vector<8x1xf32>
    %45 = vector.broadcast %44 : vector<8x1xf32> to vector<8x8xf32>
    %46 = arith.divf %42, %45 : vector<8x8xf32>
    %c0_23 = arith.constant 0 : index
    %c1_24 = arith.constant 1 : index
    %c0_25 = arith.constant 0 : index
    %c0_26 = arith.constant 0 : index
    %47 = vector.load %arg4[%c0_23, %c1_24, %c0_25, %c0_26] : memref<1x4x8x8xf32, #tpu.memory_space<vmem>>, vector<1x1x8x8xf32>
    %48 = vector.shape_cast %47 : vector<1x1x8x8xf32> to vector<8x8xf32>
    %49 = vector.shape_cast %46 : vector<8x8xf32> to vector<1x1x8x8xf32>
    tpu.vector_store %arg4[%c0_23, %c1_24, %c0_25, %c0_26], %49 {strides = array<i32>} : memref<1x4x8x8xf32, #tpu.memory_space<vmem>>, vector<1x1x8x8xf32>,
    %50 = arith.truncf %46 : vector<8x8xf32> to vector<8x8xbf16>
    %51 = vector.extract_strided_slice %5 {offsets = [0, 8], sizes = [8, 8], strides = [1, 1]} : vector<8x32xbf16> to vector<8x8xbf16>
    %cst_27 = arith.constant dense<0.000000e+00> : vector<8x8xf32>
    %52 = tpu.matmul %50, %51, %cst_27 {dimension_numbers = #tpu.dot_dimension_numbers<[1], [0], [0], [1], [0, 0, 1, 1], [], []>} : vector<8x8xbf16>, vector<8x8xbf16>, vector<8x8xf32> -> vector<8x8xf32>
    %53 = vector.extract_strided_slice %1 {offsets = [0, 16], sizes = [8, 8], strides = [1, 1]} : vector<8x32xbf16> to vector<8x8xbf16>
    %54 = vector.extract_strided_slice %3 {offsets = [0, 16], sizes = [8, 8], strides = [1, 1]} : vector<8x32xbf16> to vector<8x8xbf16>
    %cst_28 = arith.constant dense<0.000000e+00> : vector<8x8xf32>
    %55 = tpu.matmul %53, %54, %cst_28 {dimension_numbers = #tpu.dot_dimension_numbers<[1], [1], [0], [0], [0, 0, 1, 0], [], []>} : vector<8x8xbf16>, vector<8x8xbf16>, vector<8x8xf32> -> vector<8x8xf32>
    %cst_29 = arith.constant 0.353553385 : f32
    %56 = vector.broadcast %cst_29 : f32 to vector<8x8xf32>
    %57 = arith.mulf %55, %56 : vector<8x8xf32>
    %cst_30 = arith.constant -3.40282347E+38 : f32
    %58 = vector.broadcast %cst_30 : f32 to vector<8x8xf32>
    %59 = arith.select %8, %58, %57 : vector<8x8xi1>, vector<8x8xf32>
    %cst_31 = arith.constant dense<0xFF800000> : vector<8xf32>
    %60 = vector.multi_reduction <maximumf>, %59, %cst_31 [1] : vector<8x8xf32> to vector<8xf32>
    %61 = vector.shape_cast %60 : vector<8xf32> to vector<8x1xf32>
    %62 = vector.broadcast %61 : vector<8x1xf32> to vector<8x8xf32>
    %63 = arith.subf %59, %62 : vector<8x8xf32>
    %64 = math.exp %63 : vector<8x8xf32>
    %cst_32 = arith.constant dense<0.000000e+00> : vector<8xf32>
    %65 = vector.multi_reduction <add>, %64, %cst_32 [1] : vector<8x8xf32> to vector<8xf32>
    %66 = vector.shape_cast %65 : vector<8xf32> to vector<8x1xf32>
    %67 = vector.broadcast %66 : vector<8x1xf32> to vector<8x8xf32>
    %68 = arith.divf %64, %67 : vector<8x8xf32>
    %c0_33 = arith.constant 0 : index
    %c2_34 = arith.constant 2 : index
    %c0_35 = arith.constant 0 : index
    %c0_36 = arith.constant 0 : index
    %69 = vector.load %arg4[%c0_33, %c2_34, %c0_35, %c0_36] : memref<1x4x8x8xf32, #tpu.memory_space<vmem>>, vector<1x1x8x8xf32>
    %70 = vector.shape_cast %69 : vector<1x1x8x8xf32> to vector<8x8xf32>
    %71 = vector.shape_cast %68 : vector<8x8xf32> to vector<1x1x8x8xf32>
    tpu.vector_store %arg4[%c0_33, %c2_34, %c0_35, %c0_36], %71 {strides = array<i32>} : memref<1x4x8x8xf32, #tpu.memory_space<vmem>>, vector<1x1x8x8xf32>,
    %72 = arith.truncf %68 : vector<8x8xf32> to vector<8x8xbf16>
    %73 = vector.extract_strided_slice %5 {offsets = [0, 16], sizes = [8, 8], strides = [1, 1]} : vector<8x32xbf16> to vector<8x8xbf16>
    %cst_37 = arith.constant dense<0.000000e+00> : vector<8x8xf32>
    %74 = tpu.matmul %72, %73, %cst_37 {dimension_numbers = #tpu.dot_dimension_numbers<[1], [0], [0], [1], [0, 0, 1, 1], [], []>} : vector<8x8xbf16>, vector<8x8xbf16>, vector<8x8xf32> -> vector<8x8xf32>
    %75 = vector.extract_strided_slice %1 {offsets = [0, 24], sizes = [8, 8], strides = [1, 1]} : vector<8x32xbf16> to vector<8x8xbf16>
    %76 = vector.extract_strided_slice %3 {offsets = [0, 24], sizes = [8, 8], strides = [1, 1]} : vector<8x32xbf16> to vector<8x8xbf16>
    %cst_38 = arith.constant dense<0.000000e+00> : vector<8x8xf32>
    %77 = tpu.matmul %75, %76, %cst_38 {dimension_numbers = #tpu.dot_dimension_numbers<[1], [1], [0], [0], [0, 0, 1, 0], [], []>} : vector<8x8xbf16>, vector<8x8xbf16>, vector<8x8xf32> -> vector<8x8xf32>
    %cst_39 = arith.constant 0.353553385 : f32
    %78 = vector.broadcast %cst_39 : f32 to vector<8x8xf32>
    %79 = arith.mulf %77, %78 : vector<8x8xf32>
    %cst_40 = arith.constant -3.40282347E+38 : f32
    %80 = vector.broadcast %cst_40 : f32 to vector<8x8xf32>
    %81 = arith.select %8, %80, %79 : vector<8x8xi1>, vector<8x8xf32>
    %cst_41 = arith.constant dense<0xFF800000> : vector<8xf32>
    %82 = vector.multi_reduction <maximumf>, %81, %cst_41 [1] : vector<8x8xf32> to vector<8xf32>
    %83 = vector.shape_cast %82 : vector<8xf32> to vector<8x1xf32>
    %84 = vector.broadcast %83 : vector<8x1xf32> to vector<8x8xf32>
    %85 = arith.subf %81, %84 : vector<8x8xf32>
    %86 = math.exp %85 : vector<8x8xf32>
    %cst_42 = arith.constant dense<0.000000e+00> : vector<8xf32>
    %87 = vector.multi_reduction <add>, %86, %cst_42 [1] : vector<8x8xf32> to vector<8xf32>
    %88 = vector.shape_cast %87 : vector<8xf32> to vector<8x1xf32>
    %89 = vector.broadcast %88 : vector<8x1xf32> to vector<8x8xf32>
    %90 = arith.divf %86, %89 : vector<8x8xf32>
    %c0_43 = arith.constant 0 : index
    %c3 = arith.constant 3 : index
    %c0_44 = arith.constant 0 : index
    %c0_45 = arith.constant 0 : index
    %91 = vector.load %arg4[%c0_43, %c3, %c0_44, %c0_45] : memref<1x4x8x8xf32, #tpu.memory_space<vmem>>, vector<1x1x8x8xf32>
    %92 = vector.shape_cast %91 : vector<1x1x8x8xf32> to vector<8x8xf32>
    %93 = vector.shape_cast %90 : vector<8x8xf32> to vector<1x1x8x8xf32>
    tpu.vector_store %arg4[%c0_43, %c3, %c0_44, %c0_45], %93 {strides = array<i32>} : memref<1x4x8x8xf32, #tpu.memory_space<vmem>>, vector<1x1x8x8xf32>,
    %94 = arith.truncf %90 : vector<8x8xf32> to vector<8x8xbf16>
    %95 = vector.extract_strided_slice %5 {offsets = [0, 24], sizes = [8, 8], strides = [1, 1]} : vector<8x32xbf16> to vector<8x8xbf16>
    %cst_46 = arith.constant dense<0.000000e+00> : vector<8x8xf32>
    %96 = tpu.matmul %94, %95, %cst_46 {dimension_numbers = #tpu.dot_dimension_numbers<[1], [0], [0], [1], [0, 0, 1, 1], [], []>} : vector<8x8xbf16>, vector<8x8xbf16>, vector<8x8xf32> -> vector<8x8xf32>
    %97 = tpu.concatenate %30, %52, %74, %96 in 1 : vector<8x8xf32>, vector<8x8xf32>, vector<8x8xf32>, vector<8x8xf32> -> vector<8x32xf32>
    %98 = arith.truncf %97 : vector<8x32xf32> to vector<8x32xbf16>
    %c0_47 = arith.constant 0 : index
    %c0_48 = arith.constant 0 : index
    %c0_49 = arith.constant 0 : index
    %99 = vector.load %arg3[%c0_47, %c0_48, %c0_49] : memref<1x8x32xbf16, #tpu.memory_space<vmem>>, vector<1x8x32xbf16>
    %100 = vector.shape_cast %99 : vector<1x8x32xbf16> to vector<8x32xbf16>
    %101 = vector.shape_cast %98 : vector<8x32xbf16> to vector<1x8x32xbf16>
    tpu.vector_store %arg3[%c0_47, %c0_48, %c0_49], %101 {strides = array<i32>} : memref<1x8x32xbf16, #tpu.memory_space<vmem>>, vector<1x8x32xbf16>,
    return
  }
  func.func @transform_0(%arg0: i32, %arg1: i32) -> (i32, i32, i32, i32) {
    %c0_i32 = arith.constant 0 : i32
    %c0_i32_0 = arith.constant 0 : i32
    %c0_i32_1 = arith.constant 0 : i32
    return %c0_i32, %arg0, %c0_i32_0, %arg1 : i32, i32, i32, i32
  }
  func.func @transform_1(%arg0: i32, %arg1: i32) -> (i32, i32, i32) {
    %c0_i32 = arith.constant 0 : i32
    %c0_i32_0 = arith.constant 0 : i32
    return %arg0, %c0_i32, %arg1 : i32, i32, i32
  }
  func.func @transform_2(%arg0: i32, %arg1: i32) -> (i32, i32, i32, i32) {
    %c0_i32 = arith.constant 0 : i32
    %c0_i32_0 = arith.constant 0 : i32
    %c0_i32_1 = arith.constant 0 : i32
    return %arg0, %arg1, %c0_i32, %c0_i32_0 : i32, i32, i32, i32
  }
}

</mosaic_0001>

<llo_original>
// kernel: self_attention_forward.5
$region0: #{self_attention_forward.5}
  #allocation0 [shape = 'u32[]', space=smem, size = 0x4, offset = 0x4, fixed_abs, tag = 'smem constant byte address 0x4 - core index']
  #allocation1 [shape = 'u32[72,128]{1,0:T(1,128)}', space=vmem, size = 0x9000, scoped, tag = 'internal scratch']
  %s0 = inlined_call_operand.vmem [shape: bf16[16,32], index: 0, kind: input, shape index: {}]
  %s1 = inlined_call_operand.hbm [shape: bf16[32,32], index: 1, kind: input, shape index: {}]
  %s2 = inlined_call_operand.vmem [shape: f32[1,32], index: 2, kind: input, shape index: {}]
  %s3 = inlined_call_operand.hbm [shape: f32[16,32], index: 3, kind: output, shape index: {}]
  %s4 = sld [smem:[#allocation0]]
  $region26: #{self_attention_forward.5} parent=0
    _
  %s6 = ssub.s32 1, %s4
  %s7 = scalar_select 0, %s6, %s4
  $region1: #{self_attention_forward.5} parent=0
    #allocation2 [shape = 'u8[8192]{0}', space=vmem, size = 0x2000, scoped, tag = 'input window, operand 1, single buffered']
    #allocation3 [shape = 's32[1]{0}', space=sflag, size = 0x4, scoped, tag = 'scoped memory for self_attention_forward.5']
    #allocation4 [shape = 's32[1]{0}', space=sflag, size = 0x4, scoped, tag = 'scoped memory for self_attention_forward.5']
    #allocation5 [shape = 'u8[8192]{0}', space=vmem, size = 0x2000, scoped, tag = 'output window, operand 0, single buffered']
    %8 = vsyncpa [#allocation3], 0
    %9 = vsyncpa [#allocation4], 0
    // Predicated region
    $region2: #{self_attention_forward.5} parent=1 // pred_check
      _
    $region3: #{self_attention_forward.5} parent=1 // pred_check_branch
      %11 = sbr.rel (0) target = $region5
    $region4: #{self_attention_forward.5} parent=1 // pred_region
      _
    $region5: #{self_attention_forward.5} parent=1 // pred_fallthru
      _
    // Predicated region
    $region6: #{self_attention_forward.5} parent=1 // pred_check
      _
    $region7: #{self_attention_forward.5} parent=1 // pred_check_branch
      %13 = sbr.rel (0) target = $region9
    $region8: #{self_attention_forward.5} parent=1 // pred_region
      %15 = vsyncadd [#allocation3], 0
      %s16 = sshll.u32 %s1, 4
      %s17 = int_to_ptr.hbm [resolvable:$true] %s16
      %s18 = sshll.u32 [#allocation2], 4
      %s19 = int_to_ptr.vmem [resolvable:$true] %s18
      %24 = dma.hbm_to_vmem [thread:$0]  %s17, 256, %s19, [#allocation3], 64, 64, 4
    $region9: #{self_attention_forward.5} parent=1 // pred_fallthru
      _
    // Predicated region
    $region10: #{self_attention_forward.5} parent=1 // pred_check
      _
    $region11: #{self_attention_forward.5} parent=1 // pred_check_branch
      %26 = sbr.rel (0) target = $region13
    $region12: #{self_attention_forward.5} parent=1 // pred_region
      _
    $region13: #{self_attention_forward.5} parent=1 // pred_fallthru
      _
    // Predicated region
    $region14: #{self_attention_forward.5} parent=1 // pred_check
      _
    $region15: #{self_attention_forward.5} parent=1 // pred_check_branch
      %28 = sbr.rel (0) target = $region17
    $region16: #{self_attention_forward.5} parent=1 // pred_region
      %30 = dma.done [#allocation3], 256
    $region17: #{self_attention_forward.5} parent=1 // pred_fallthru
      _
    %v32 = vld [vmem:[%s0] sm:$0xf]
    %v33 = vld [vmem:[%s0 + $0x4] sm:$0xf]
    %v34 = vld [vmem:[#allocation2] sm:$0xf]
    %v35 = vld [vmem:[#allocation2 + $0x4] sm:$0xf]
    %v36 = vld [vmem:[#allocation2 + $0x8] sm:$0xf]
    %v37 = vld [vmem:[#allocation2 + $0xc] sm:$0xf]
    %v38 = vld [vmem:[%s2] sm:$0x1]
    %v40 = vperm.slane %v38, 0
    %v44 = vunpack.c.l.b16 %v32
    %v45 = vunpack.c.l.b16 %v33
    %v46 = vpack.c.b16 %v45, %v44
    %v51 = vunpack.c.l.b16 %v34
    %v52 = vunpack.c.l.b16 %v35
    %v53 = vunpack.c.l.b16 %v36
    %v54 = vunpack.c.l.b16 %v37
    %v55 = vpack.c.b16 %v52, %v51
    %v56 = vpack.c.b16 %v54, %v53
    %vm59 = vcmask 261120
    %v61 = vsel %vm59, %v46, 0
    %63 = vmatpush.bf16.msra.mxu0 0
    %64 = vmatpush.bf16.msra.mxu0 0
    %65 = vmatpush.bf16.msra.mxu0 0
    %66 = vmatpush.bf16.msra.mxu0 0
    %67 = vmatpush.bf16.msra.mxu0 0
    %68 = vmatpush.bf16.msra.mxu0 0
    %69 = vmatpush.bf16.msra.mxu0 %v56
    %70 = vmatpush.bf16.msra.mxu0 %v55
    %71 = vmatmul.bf16.gmra.mxu0 %v61
    %v72 = vpop.f32.mrf.mxu0
    %v73 = vadd.f32 %v40, %v72
    %v74 = vpop.f32.mrf.mxu0
    %v75 = vadd.f32 %v40, %v74
    %76 = vdwg.mxu0
    %77 = vst.msk [vmem:[#allocation5] sm:$0xff] %vm59, %v73
    %78 = vst.msk [vmem:[#allocation5 + $0x8] sm:$0xff] %vm59, %v75
    // Predicated region
    $region18: #{self_attention_forward.5} parent=1 // pred_check
      _
    $region19: #{self_attention_forward.5} parent=1 // pred_check_branch
      %80 = sbr.rel (0) target = $region21
    $region20: #{self_attention_forward.5} parent=1 // pred_region
      %82 = vsyncadd [#allocation4], 0
      %s83 = sshll.u32 [#allocation5], 4
      %s84 = int_to_ptr.vmem [resolvable:$true] %s83
      %s85 = sshll.u32 %s3, 4
      %s86 = int_to_ptr.hbm [resolvable:$true] %s85
      %91 = dma.vmem_to_hbm [thread:$0]  %s84, 256, %s86, [#allocation4], 128, 128, 8
    $region21: #{self_attention_forward.5} parent=1 // pred_fallthru
      _
    // Predicated region
    $region22: #{self_attention_forward.5} parent=1 // pred_check
      _
    $region23: #{self_attention_forward.5} parent=1 // pred_check_branch
      %93 = sbr.rel (0) target = $region25
    $region24: #{self_attention_forward.5} parent=1 // pred_region
      %95 = dma.done [#allocation4], 256
    $region25: #{self_attention_forward.5} parent=1 // pred_fallthru
      _
    %96 = vsyncpa [#allocation3], 1
    %97 = vsyncpa [#allocation4], 1

// kernel: self_attention_forward.3
$region0: #{self_attention_forward.3}
  #allocation0 [shape = 'u32[]', space=smem, size = 0x4, offset = 0x4, fixed_abs, tag = 'smem constant byte address 0x4 - core index']
  #allocation1 [shape = 'u32[72,128]{1,0:T(1,128)}', space=vmem, size = 0x9000, scoped, tag = 'internal scratch']
  %s0 = inlined_call_operand.hbm [shape: f32[16,32], index: 0, kind: input, shape index: {}]
  %s1 = inlined_call_operand.hbm [shape: bf16[32,96], index: 1, kind: input, shape index: {}]
  %s2 = inlined_call_operand.vmem [shape: bf16[3,16,32], index: 2, kind: output, shape index: {}]
  %s3 = sld [smem:[#allocation0]]
  $region26: #{self_attention_forward.3} parent=0
    _
  %s5 = ssub.s32 1, %s3
  %s6 = scalar_select 0, %s5, %s3
  $region1: #{self_attention_forward.3} parent=0
    #allocation2 [shape = 'u8[8192]{0}', space=vmem, size = 0x2000, scoped, tag = 'input window, operand 0, single buffered']
    #allocation3 [shape = 's32[1]{0}', space=sflag, size = 0x4, scoped, tag = 'scoped memory for self_attention_forward.3']
    #allocation4 [shape = 'u8[8192]{0}', space=vmem, size = 0x2000, scoped, tag = 'input window, operand 1, single buffered']
    #allocation5 [shape = 's32[1]{0}', space=sflag, size = 0x4, scoped, tag = 'scoped memory for self_attention_forward.3']
    %7 = vsyncpa [#allocation3], 0
    %8 = vsyncpa [#allocation5], 0
    // Predicated region
    $region2: #{self_attention_forward.3} parent=1 // pred_check
      _
    $region3: #{self_attention_forward.3} parent=1 // pred_check_branch
      %10 = sbr.rel (0) target = $region5
    $region4: #{self_attention_forward.3} parent=1 // pred_region
      %12 = vsyncadd [#allocation3], 0
      %s13 = sshll.u32 %s0, 4
      %s14 = int_to_ptr.hbm [resolvable:$true] %s13
      %s15 = sshll.u32 [#allocation2], 4
      %s16 = int_to_ptr.vmem [resolvable:$true] %s15
      %21 = dma.hbm_to_vmem [thread:$0]  %s14, 256, %s16, [#allocation3], 128, 128, 8
    $region5: #{self_attention_forward.3} parent=1 // pred_fallthru
      _
    // Predicated region
    $region6: #{self_attention_forward.3} parent=1 // pred_check
      _
    $region7: #{self_attention_forward.3} parent=1 // pred_check_branch
      %23 = sbr.rel (0) target = $region9
    $region8: #{self_attention_forward.3} parent=1 // pred_region
      %25 = vsyncadd [#allocation5], 0
      %s26 = sshll.u32 %s1, 4
      %s27 = int_to_ptr.hbm [resolvable:$true] %s26
      %s28 = sshll.u32 [#allocation4], 4
      %s29 = int_to_ptr.vmem [resolvable:$true] %s28
      %34 = dma.hbm_to_vmem [thread:$0]  %s27, 256, %s29, [#allocation5], 64, 64, 4
    $region9: #{self_attention_forward.3} parent=1 // pred_fallthru
      _
    // Predicated region
    $region10: #{self_attention_forward.3} parent=1 // pred_check
      _
    $region11: #{self_attention_forward.3} parent=1 // pred_check_branch
      %36 = sbr.rel (0) target = $region13
    $region12: #{self_attention_forward.3} parent=1 // pred_region
      %38 = dma.done [#allocation3], 256
    $region13: #{self_attention_forward.3} parent=1 // pred_fallthru
      _
    // Predicated region
    $region14: #{self_attention_forward.3} parent=1 // pred_check
      _
    $region15: #{self_attention_forward.3} parent=1 // pred_check_branch
      %40 = sbr.rel (0) target = $region17
    $region16: #{self_attention_forward.3} parent=1 // pred_region
      %42 = dma.done [#allocation5], 256
    $region17: #{self_attention_forward.3} parent=1 // pred_fallthru
      _
    %v44 = vld [vmem:[#allocation2] sm:$0xff]
    %v45 = vld [vmem:[#allocation2 + $0x8] sm:$0xff]
    %v46 = vpack.c.bf16 %v45, %v44
    %v47 = vld [vmem:[#allocation4] sm:$0xf]
    %v48 = vld [vmem:[#allocation4 + $0x4] sm:$0xf]
    %v49 = vld [vmem:[#allocation4 + $0x8] sm:$0xf]
    %v50 = vld [vmem:[#allocation4 + $0xc] sm:$0xf]
    %v55 = vunpack.c.l.b16 %v47
    %v56 = vunpack.c.l.b16 %v48
    %v57 = vunpack.c.l.b16 %v49
    %v58 = vunpack.c.l.b16 %v50
    %v59 = vpack.c.b16 %v56, %v55
    %v60 = vpack.c.b16 %v58, %v57
    %vm63 = vcmask 261120
    %v65 = vsel %vm63, %v46, 0
    %67 = vmatpush.bf16.msra.mxu0 0
    %68 = vmatpush.bf16.msra.mxu0 0
    %69 = vmatpush.bf16.msra.mxu0 0
    %70 = vmatpush.bf16.msra.mxu0 0
    %71 = vmatpush.bf16.msra.mxu0 0
    %72 = vmatpush.bf16.msra.mxu0 0
    %73 = vmatpush.bf16.msra.mxu0 %v60
    %74 = vmatpush.bf16.msra.mxu0 %v59
    %75 = vmatmul.bf16.gmra.mxu0 %v65
    %v76 = vpop.f32.mrf.mxu0
    %v77 = vadd.f32 0.0, %v76
    %v78 = vpop.f32.mrf.mxu0
    %v79 = vadd.f32 0.0, %v78
    %80 = vdwg.mxu0
    %v81 = vpack.c.bf16 %v77, %v77
    %v82 = vpack.c.bf16 %v79, %v79
    %vm83 = vcmask 257024
    %84 = vst.msk [vmem:[%s2] sm:$0xf] %vm83, %v81
    %85 = vst.msk [vmem:[%s2 + $0x4] sm:$0xf] %vm83, %v82
    %88 = vrot.lane.b32.xlu0 %v81, 96
    %v89 = vpop.permute.xlu0 %88
    %90 = vrot.lane.b32.xlu0 %v82, 96
    %v91 = vpop.permute.xlu0 %90
    %s94 = scalar_lea.vmem %s2, 8
    %95 = vst.msk [vmem:[%s94] sm:$0xf] %vm83, %v89
    %96 = vst.msk [vmem:[%s94 + $0x4] sm:$0xf] %vm83, %v91
    %97 = vrot.lane.b32.xlu0 %v81, 64
    %v98 = vpop.permute.xlu0 %97
    %99 = vrot.lane.b32.xlu0 %v82, 64
    %v100 = vpop.permute.xlu0 %99
    %s103 = scalar_lea.vmem %s2, 16
    %104 = vst.msk [vmem:[%s103] sm:$0xf] %vm83, %v98
    %105 = vst.msk [vmem:[%s103 + $0x4] sm:$0xf] %vm83, %v100
    // Predicated region
    $region18: #{self_attention_forward.3} parent=1 // pred_check
      _
    $region19: #{self_attention_forward.3} parent=1 // pred_check_branch
      %107 = sbr.rel (0) target = $region21
    $region20: #{self_attention_forward.3} parent=1 // pred_region
      _
    $region21: #{self_attention_forward.3} parent=1 // pred_fallthru
      _
    // Predicated region
    $region22: #{self_attention_forward.3} parent=1 // pred_check
      _
    $region23: #{self_attention_forward.3} parent=1 // pred_check_branch
      %109 = sbr.rel (0) target = $region25
    $region24: #{self_attention_forward.3} parent=1 // pred_region
      _
    $region25: #{self_attention_forward.3} parent=1 // pred_fallthru
      _
    %110 = vsyncpa [#allocation3], 1
    %111 = vsyncpa [#allocation5], 1

// kernel: self_attention_forward.4
$region0: #{self_attention_forward.4}
  #allocation0 [shape = 'u32[]', space=smem, size = 0x4, offset = 0x4, fixed_abs, tag = 'smem constant byte address 0x4 - core index']
  #allocation1 [shape = 'u32[72,128]{1,0:T(1,128)}', space=vmem, size = 0x9000, scoped, tag = 'internal scratch']
  %s0 = inlined_call_operand.vmem [shape: bf16[3,2,8,32], index: 0, kind: input, shape index: {}]
  %s1 = inlined_call_operand.vmem [shape: bf16[2,8,32], index: 1, kind: output, shape index: {0}]
  %s2 = inlined_call_operand.hbm [shape: f32[2,4,8,8], index: 2, kind: output, shape index: {1}]
  %3 = xla_tuple %s1, %s2
  %s4 = sld [smem:[#allocation0]]
  $region86: #{self_attention_forward.4} parent=0
    _
  %s6 = ssub.s32 1, %s4
  %s7 = scalar_select 0, %s6, %s4
  $region1: #{self_attention_forward.4} parent=0
    #allocation2 [shape = 'u8[12288]{0}', space=vmem, size = 0x3000, scoped, tag = 'input window, operand 0']
    #allocation3 [shape = 'u8[32768]{0}', space=vmem, size = 0x8000, scoped, tag = 'output window, operand 1']
    #allocation4 [shape = 's32[2]{0}', space=sflag, size = 0x8, scoped, tag = 'scoped memory for self_attention_forward.4']
    %8 = vsyncpa [#allocation4], 0
    %s9 = scalar_lea.sflag [#allocation4], 1
    %10 = vsyncpa %s9, 0
    loop: start=0, step=1, limit=4
    $region2: #{self_attention_forward.4} parent=1 // loop_pre_header
      _
    $region3: #{self_attention_forward.4} parent=1 // loop_header
      %s12 = sphi 0, %s16
      %p13 = scmp.ge.s32.totalorder %s12, 4
      %s19 = sphi 0, %s31
      %s20 = sphi 0, %s27
      %s21 = sphi 0, %s19
      %s22 = sphi 0, %s20
      %s23 = sphi 0, %s21
      %s24 = sphi 0, %s22
      %s36 = sphi 0, %s38
      %s39 = sphi 0, %s36
      %s40 = sphi 0, %s39
      %s56 = sphi 0, %s40
      %s64 = sphi 0, %s66
      %s67 = sphi 0, %s64
      %s68 = sphi 0, %s67
      %s84 = sphi 0, %s68
      %s92 = sphi 0, %s94
      %s95 = sphi 0, %s92
      %s96 = sphi 0, %s95
      %s112 = sphi 0, %s96
    $region4: #{self_attention_forward.4} parent=1 // loop_header_branch
      %15 = sbr.rel (%p13) target = $region8
    $region5: #{self_attention_forward.4} parent=1 // loop_body
      %s17 = ssub.s32 %s12, 1
      %s18 = ssub.s32 %s12, 2
      %s25 = sadd.s32 1, %s20
      %p26 = scmp.ge.s32.totalorder %s25, 1
      %s27 = scalar_select %p26, 0, %s25
      %s28 = sadd.s32 1, %s19
      %s29 = scalar_select %p26, %s28, %s19
      %p30 = scmp.ge.s32.totalorder %s29, 2
      %s31 = scalar_select %p30, 0, %s29
      %s32 = ssub.s32 %s19, %s31
      %s33 = ssub.s32 %s20, %s27
      %s34 = sor.u32 %s32, %s33
      %p35 = scmp.eq.s32.totalorder %s34, 0
      %s37 = sadd.s32 %s36, 1
      %s38 = scalar_select %p35, %s36, %s37
      %p41 = pneg %p35
      %p42 = scmp.eq.s32.totalorder %s12, 1
      %p43 = por %p41, %p42
      %p44 = scmp.ne.s32.totalorder %s36, %s39
      %p45 = scmp.eq.s32.totalorder %s12, 0
      %p46 = por %p44, %p45
      %p47 = scmp.ne.s32.totalorder %s36, %s39
      %p48 = scmp.eq.s32.totalorder %s17, 1
      %p49 = por %p47, %p48
      %p50 = scmp.ne.s32.totalorder %s39, %s40
      %p51 = scmp.eq.s32.totalorder %s17, 0
      %p52 = por %p50, %p51
      %p53 = scmp.ne.s32.totalorder %s39, %s40
      %p54 = scmp.eq.s32.totalorder %s18, 1
      %p55 = por %p53, %p54
      %p57 = scmp.ne.s32.totalorder %s40, %s56
      %p58 = scmp.eq.s32.totalorder %s18, 0
      %p59 = por %p57, %p58
      %s60 = ssub.s32 %s19, %s31
      %s61 = ssub.s32 %s20, %s27
      %s62 = sor.u32 %s60, %s61
      %p63 = scmp.eq.s32.totalorder %s62, 0
      %s65 = sadd.s32 %s64, 1
      %s66 = scalar_select %p63, %s64, %s65
      %p69 = pneg %p63
      %p70 = scmp.eq.s32.totalorder %s12, 1
      %p71 = por %p69, %p70
      %p72 = scmp.ne.s32.totalorder %s64, %s67
      %p73 = scmp.eq.s32.totalorder %s12, 0
      %p74 = por %p72, %p73
      %p75 = scmp.ne.s32.totalorder %s64, %s67
      %p76 = scmp.eq.s32.totalorder %s17, 1
      %p77 = por %p75, %p76
      %p78 = scmp.ne.s32.totalorder %s67, %s68
      %p79 = scmp.eq.s32.totalorder %s17, 0
      %p80 = por %p78, %p79
      %p81 = scmp.ne.s32.totalorder %s67, %s68
      %p82 = scmp.eq.s32.totalorder %s18, 1
      %p83 = por %p81, %p82
      %p85 = scmp.ne.s32.totalorder %s68, %s84
      %p86 = scmp.eq.s32.totalorder %s18, 0
      %p87 = por %p85, %p86
      %s88 = ssub.s32 %s19, %s31
      %s89 = ssub.s32 %s20, %s27
      %s90 = sor.u32 %s88, %s89
      %p91 = scmp.eq.s32.totalorder %s90, 0
      %s93 = sadd.s32 %s92, 1
      %s94 = scalar_select %p91, %s92, %s93
      %p97 = pneg %p91
      %p98 = scmp.eq.s32.totalorder %s12, 1
      %p99 = por %p97, %p98
      %p100 = scmp.ne.s32.totalorder %s92, %s95
      %p101 = scmp.eq.s32.totalorder %s12, 0
      %p102 = por %p100, %p101
      %p103 = scmp.ne.s32.totalorder %s92, %s95
      %p104 = scmp.eq.s32.totalorder %s17, 1
      %p105 = por %p103, %p104
      %p106 = scmp.ne.s32.totalorder %s95, %s96
      %p107 = scmp.eq.s32.totalorder %s17, 0
      %p108 = por %p106, %p107
      %p109 = scmp.ne.s32.totalorder %s95, %s96
      %p110 = scmp.eq.s32.totalorder %s18, 1
      %p111 = por %p109, %p110
      %p113 = scmp.ne.s32.totalorder %s96, %s112
      %p114 = scmp.eq.s32.totalorder %s18, 0
      %p115 = por %p113, %p114
      %p116 = scmp.le.s32.totalorder 1, %s12
      %p117 = scmp.lt.s32.totalorder %s12, 3
      %p118 = pnand %p116, %p117
      %p119 = pneg %p118
      // Predicated region
      $region9: #{self_attention_forward.4} parent=5 // pred_check
        _
      $region10: #{self_attention_forward.4} parent=5 // pred_check_branch
        %121 = sbr.rel (%p118) target = $region12
      $region11: #{self_attention_forward.4} parent=5 // pred_region
        %s122 = ssub.s32 %s12, 1
      $region12: #{self_attention_forward.4} parent=5 // pred_fallthru
        _
      %p123 = scmp.lt.s32.totalorder %s12, 2
      // Predicated region
      $region13: #{self_attention_forward.4} parent=5 // pred_check
        %p124 = pneg %p123
      $region14: #{self_attention_forward.4} parent=5 // pred_check_branch
        %126 = sbr.rel (%p124) target = $region16
      $region15: #{self_attention_forward.4} parent=5 // pred_region
        // Predicated region
        $region17: #{self_attention_forward.4} parent=15 // pred_check
          %p127 = pneg %p46
        $region18: #{self_attention_forward.4} parent=15 // pred_check_branch
          %129 = sbr.rel (%p127) target = $region20
        $region19: #{self_attention_forward.4} parent=15 // pred_region
          %s130 = sand.u32 %s36, 1
          %s131 = sand.u32 %s36, 1
          %s132 = smul.addr %s131, 12
          %s133 = scalar_lea.vmem [#allocation2], %s132
          %s134 = sadd.s32 %s20, %s19
          %s135 = smul.addr %s134, 4
          %s136 = scalar_lea.vmem %s0, %s135
          // Predicated region
          $region21: #{self_attention_forward.4} parent=19 // pred_check
            _
          $region22: #{self_attention_forward.4} parent=19 // pred_check_branch
            %138 = sbr.rel (0) target = $region24
          $region23: #{self_attention_forward.4} parent=19 // pred_region
            // Predicated region
            $region25: #{self_attention_forward.4} parent=23 // pred_check
              _
            $region26: #{self_attention_forward.4} parent=23 // pred_check_branch
              %140 = sbr.rel target = $region28
            $region27: #{self_attention_forward.4} parent=23 // pred_region
              // Predicated region
              $region40: #{self_attention_forward.4} parent=27 // pred_check
                _
              $region41: #{self_attention_forward.4} parent=27 // pred_check_branch
                %160 = sbr.rel (0) target = $region43
              $region42: #{self_attention_forward.4} parent=27 // pred_region
                loop: start=0, step=1, limit=1
                $region44: #{self_attention_forward.4} parent=42 // loop_pre_header
                  _
                $region45: #{self_attention_forward.4} parent=42 // loop_header
                  %s162 = sphi 0, %s166
                  %p163 = scmp.ge.s32.totalorder %s162, 1
                  %s167 = sphi %s136, %s136
                  %s168 = sphi %s133, %s133
                $region46: #{self_attention_forward.4} parent=42 // loop_header_branch
                  %165 = sbr.rel (%p163) target = $region50
                $region47: #{self_attention_forward.4} parent=42 // loop_body
                  _
                $region48: #{self_attention_forward.4} parent=42 // loop_footer
                  %s166 = sadd.s32 1, %s162
                $region49: #{self_attention_forward.4} parent=42 // loop_footer_branch
                  %161 = sbr.rel target = $region45
                $region50: #{self_attention_forward.4} parent=42 // loop_exit
                  _
                %s170 = ssub.s32 16, 1
                loop: start=0, step=1, limit=1
                $region51: #{self_attention_forward.4} parent=42 // loop_pre_header
                  _
                $region52: #{self_attention_forward.4} parent=42 // loop_header
                  %s172 = sphi 0, %s176
                  %p173 = scmp.ge.s32.totalorder %s172, 1
                  %s177 = sphi %s136, %s136
                  %s178 = sphi %s133, %s133
                $region53: #{self_attention_forward.4} parent=42 // loop_header_branch
                  %175 = sbr.rel (%p173) target = $region57
                $region54: #{self_attention_forward.4} parent=42 // loop_body
                  %v179 = vld [vmem:[%s177] sm:%s170]
                  %180 = vst [vmem:[%s178] sm:%s170] %v179
                  %v181 = vld [vmem:[%s177 + $0x8] sm:%s170]
                  %182 = vst [vmem:[%s178 + $0x4] sm:%s170] %v181
                  %v183 = vld [vmem:[%s177 + $0x10] sm:%s170]
                  %184 = vst [vmem:[%s178 + $0x8] sm:%s170] %v183
                $region55: #{self_attention_forward.4} parent=42 // loop_footer
                  %s176 = sadd.s32 1, %s172
                $region56: #{self_attention_forward.4} parent=42 // loop_footer_branch
                  %171 = sbr.rel target = $region52
                $region57: #{self_attention_forward.4} parent=42 // loop_exit
                  _
              $region43: #{self_attention_forward.4} parent=27 // pred_fallthru
                _
            $region28: #{self_attention_forward.4} parent=23 // pred_fallthru
              _
            // Predicated region
            $region29: #{self_attention_forward.4} parent=23 // pred_check
              _
            $region30: #{self_attention_forward.4} parent=23 // pred_check_branch
              %142 = sbr.rel (0) target = $region32
            $region31: #{self_attention_forward.4} parent=23 // pred_region
              %s144 = ssub.s32 16, 1
              loop: start=0, step=1, limit=1
              $region33: #{self_attention_forward.4} parent=31 // loop_pre_header
                _
              $region34: #{self_attention_forward.4} parent=31 // loop_header
                %s146 = sphi 0, %s150
                %p147 = scmp.ge.s32.totalorder %s146, 1
                %s151 = sphi %s136, %s136
                %s152 = sphi %s133, %s133
              $region35: #{self_attention_forward.4} parent=31 // loop_header_branch
                %149 = sbr.rel (%p147) target = $region39
              $region36: #{self_attention_forward.4} parent=31 // loop_body
                %v153 = vld [vmem:[%s151] sm:%s144]
                %154 = vst [vmem:[%s152] sm:%s144] %v153
                %v155 = vld [vmem:[%s151 + $0x8] sm:%s144]
                %156 = vst [vmem:[%s152 + $0x4] sm:%s144] %v155
                %v157 = vld [vmem:[%s151 + $0x10] sm:%s144]
                %158 = vst [vmem:[%s152 + $0x8] sm:%s144] %v157
              $region37: #{self_attention_forward.4} parent=31 // loop_footer
                %s150 = sadd.s32 1, %s146
              $region38: #{self_attention_forward.4} parent=31 // loop_footer_branch
                %145 = sbr.rel target = $region34
              $region39: #{self_attention_forward.4} parent=31 // loop_exit
                _
            $region32: #{self_attention_forward.4} parent=23 // pred_fallthru
              _
          $region24: #{self_attention_forward.4} parent=19 // pred_fallthru
            _
          %185 = vnop
        $region20: #{self_attention_forward.4} parent=15 // pred_fallthru
          _
      $region16: #{self_attention_forward.4} parent=5 // pred_fallthru
        _
      %p186 = scmp.le.s32.totalorder 1, %s12
      %p187 = scmp.lt.s32.totalorder %s12, 3
      %p188 = pnand %p186, %p187
      %p189 = pneg %p188
      // Predicated region
      $region58: #{self_attention_forward.4} parent=5 // pred_check
        _
      $region59: #{self_attention_forward.4} parent=5 // pred_check_branch
        %191 = sbr.rel (%p188) target = $region61
      $region60: #{self_attention_forward.4} parent=5 // pred_region
        %s192 = ssub.s32 %s12, 1
        %s193 = sand.u32 %s39, 1
        %s194 = sand.u32 %s39, 1
        %s195 = smul.addr %s194, 12
        %s196 = scalar_lea.vmem [#allocation2], %s195
        // Predicated region
        $region62: #{self_attention_forward.4} parent=60 // pred_check
          %p197 = pneg %p52
        $region63: #{self_attention_forward.4} parent=60 // pred_check_branch
          %199 = sbr.rel (%p197) target = $region65
        $region64: #{self_attention_forward.4} parent=60 // pred_region
          _
        $region65: #{self_attention_forward.4} parent=60 // pred_fallthru
          _
        %s200 = sand.u32 %s39, 1
        %s201 = sand.u32 %s39, 1
        %s202 = smul.addr %s201, 12
        %s203 = scalar_lea.vmem [#allocation2], %s202
        %p204 = pneg %p52
        %p205 = pneg %p49
        %p206 = pneg %p80
        %p207 = pneg %p77
        %p208 = scmp.lt.s32.totalorder %s21, 1
        %s209 = scalar_select %p208, %s21, 1
        %p210 = scmp.lt.s32.totalorder %s22, 0
        %s211 = scalar_select %p210, %s22, 0
        %s212 = sadd.s32 %s211, %s209
        %s213 = smul.addr %s212, 4
        %s214 = scalar_lea.vmem %s1, %s213
        %p215 = pneg %p108
        %p216 = pneg %p105
        %s217 = sand.u32 %s95, 1
        %s218 = scalar_lea.sflag [#allocation4], %s217
        %s219 = sand.u32 %s95, 1
        %s220 = smul.addr %s219, 32
        %s221 = scalar_lea.vmem [#allocation3], %s220
        %p222 = scmp.lt.s32.totalorder %s21, 1
        %s223 = scalar_select %p222, %s21, 1
        %p224 = scmp.lt.s32.totalorder %s22, 0
        %s225 = scalar_select %p224, %s22, 0
        %s226 = sadd.s32 %s225, %s223
        %s227 = smul.addr %s226, 4
        %s228 = scalar_lea.vmem %s1, %s227
        %s229 = smul.u32 4, %s22
        %v231 = vld [vmem:[%s196] sm:$0xf]
        %s232 = scalar_lea.vmem %s196, 4 [#allocation2]
        %v233 = vld [vmem:[%s232] sm:$0xf]
        %s234 = scalar_lea.vmem %s196, 8 [#allocation2]
        %v235 = vld [vmem:[%s234] sm:$0xf]
        %v236 = vlaneseq
        %v237 = vshrl.u32 %v236, 7
        %v238 = vlaneseq
        %v239 = vand.u32 %v238, 127
        %vm240 = vcmp.gt.s32.totalorder %v239, %v237
        %vm241 = vcmask 64512
        %v243 = vsel %vm241, %v231, 0
        %v246 = vsel %vm241, %v233, 0
        %248 = vmatpush.bf16.xpose.msra.mxu0 0
        %249 = vmatpush.bf16.xpose.msra.mxu0 0
        %250 = vmatpush.bf16.xpose.msra.mxu0 0
        %251 = vmatpush.bf16.xpose.msra.mxu0 0
        %252 = vmatpush.bf16.xpose.msra.mxu0 0
        %253 = vmatpush.bf16.xpose.msra.mxu0 0
        %254 = vmatpush.bf16.xpose.msra.mxu0 0
        %255 = vmatpush.bf16.xpose.msra.mxu0 %v246
        %256 = vmatmul.bf16.gmra.mxu0 %v243
        %v257 = vpop.f32.mrf.mxu0
        %v258 = vadd.f32 0.0, %v257
        %v259 = vpop.f32.mrf.mxu0
        %260 = vdwg.mxu0
        %v261 = vmul.f32 %v258, 0.35355338
        %v262 = vsel %vm240, -3.4028235e+38, %v261
        %v263 = vsel %vm241, %v262, -inf
        %264 = vmax.xlane.f32.xlu0 %v263
        %v265 = vpop.xlane.xlu0 %264
        %v266 = vsub.f32 %v262, %v265
        %v267 = vmul.f32 %v266, 1.442695
        %v268 = vpow.pop %v267
        %v269 = vsel %vm241, %v268, 0.0
        %270 = vadd.xlane.f32.xlu0 %v269
        %v271 = vpop.xlane.xlu0 %270
        %v272 = vrcp.pop %v271
        %v273 = vmul.f32 %v271, %v272
        %v274 = vsub.f32 1.0, %v273
        %v275 = vmul.f32 %v272, %v274
        %v276 = vadd.f32 %v272, %v275
        %vm277 = vweird.f32 %v271
        %vm278 = vweird.f32 %v272
        %vm279 = vmor %vm277, %vm278
        %v280 = vsel %vm279, %v272, %v276
        %v281 = vand.u32 2147483647, %v271
        %vm282 = vcmp.eq.f32.partialorder %v281, 8.507059e+37
        %v283 = vand.u32 %v271, 2147483648
        %v284 = vor.u32 1.1754944e-38, %v283
        %v285 = vsel %vm282, %v284, %v280
        %v286 = vmul.f32 %v268, %v285
        %287 = vst.msk [vmem:[%s221] sm:$0xff] %vm241, %v286
        %v288 = vpack.c.bf16 %v286, %v286
        %v290 = vsel %vm241, %v288, 0
        %vm292 = vcmask 1043456
        %v294 = vsel %vm292, %v235, 0
        %296 = vmatpush.bf16.msra.mxu0 0
        %297 = vmatpush.bf16.msra.mxu0 0
        %298 = vmatpush.bf16.msra.mxu0 0
        %299 = vmatpush.bf16.msra.mxu0 0
        %300 = vmatpush.bf16.msra.mxu0 0
        %301 = vmatpush.bf16.msra.mxu0 0
        %302 = vmatpush.bf16.msra.mxu0 0
        %303 = vmatpush.bf16.msra.mxu0 %v294
        %304 = vmatmul.bf16.gmra.mxu0 %v290
        %v305 = vpop.f32.mrf.mxu0
        %v306 = vadd.f32 0.0, %v305
        %v307 = vpop.f32.mrf.mxu0
        %308 = vdwg.mxu0
        %v310 = vunpack.c.l.b16 %v231
        %v311 = vpack.c.b16 %v310, %v310
        %312 = vrot.lane.b32.xlu0 %v311, 120
        %v313 = vpop.permute.xlu0 %312
        %v315 = vunpack.c.l.b16 %v233
        %v316 = vpack.c.b16 %v315, %v315
        %317 = vrot.lane.b32.xlu0 %v316, 120
        %v318 = vpop.permute.xlu0 %317
        %v320 = vsel %vm241, %v313, 0
        %v323 = vsel %vm241, %v318, 0
        %325 = vmatpush.bf16.xpose.msra.mxu0 0
        %326 = vmatpush.bf16.xpose.msra.mxu0 0
        %327 = vmatpush.bf16.xpose.msra.mxu0 0
        %328 = vmatpush.bf16.xpose.msra.mxu0 0
        %329 = vmatpush.bf16.xpose.msra.mxu0 0
        %330 = vmatpush.bf16.xpose.msra.mxu0 0
        %331 = vmatpush.bf16.xpose.msra.mxu0 0
        %332 = vmatpush.bf16.xpose.msra.mxu0 %v323
        %333 = vmatmul.bf16.gmra.mxu0 %v320
        %v334 = vpop.f32.mrf.mxu0
        %v335 = vadd.f32 0.0, %v334
        %v336 = vpop.f32.mrf.mxu0
        %337 = vdwg.mxu0
        %v338 = vmul.f32 %v335, 0.35355338
        %v339 = vsel %vm240, -3.4028235e+38, %v338
        %v340 = vsel %vm241, %v339, -inf
        %341 = vmax.xlane.f32.xlu0 %v340
        %v342 = vpop.xlane.xlu0 %341
        %v343 = vsub.f32 %v339, %v342
        %v344 = vmul.f32 %v343, 1.442695
        %v345 = vpow.pop %v344
        %v346 = vsel %vm241, %v345, 0.0
        %347 = vadd.xlane.f32.xlu0 %v346
        %v348 = vpop.xlane.xlu0 %347
        %v349 = vrcp.pop %v348
        %v350 = vmul.f32 %v348, %v349
        %v351 = vsub.f32 1.0, %v350
        %v352 = vmul.f32 %v349, %v351
        %v353 = vadd.f32 %v349, %v352
        %vm354 = vweird.f32 %v348
        %vm355 = vweird.f32 %v349
        %vm356 = vmor %vm354, %vm355
        %v357 = vsel %vm356, %v349, %v353
        %v358 = vand.u32 2147483647, %v348
        %vm359 = vcmp.eq.f32.partialorder %v358, 8.507059e+37
        %v360 = vand.u32 %v348, 2147483648
        %v361 = vor.u32 1.1754944e-38, %v360
        %v362 = vsel %vm359, %v361, %v357
        %v363 = vmul.f32 %v345, %v362
        %s364 = scalar_lea.vmem %s221, 8 [#allocation3]
        %365 = vst.msk [vmem:[%s364] sm:$0xff] %vm241, %v363
        %v366 = vpack.c.bf16 %v363, %v363
        %v368 = vunpack.c.l.b16 %v235
        %v369 = vpack.c.b16 %v368, %v368
        %370 = vrot.lane.b32.xlu0 %v369, 120
        %v371 = vpop.permute.xlu0 %370
        %v373 = vsel %vm241, %v366, 0
        %v376 = vsel %vm292, %v371, 0
        %378 = vmatpush.bf16.msra.mxu0 0
        %379 = vmatpush.bf16.msra.mxu0 0
        %380 = vmatpush.bf16.msra.mxu0 0
        %381 = vmatpush.bf16.msra.mxu0 0
        %382 = vmatpush.bf16.msra.mxu0 0
        %383 = vmatpush.bf16.msra.mxu0 0
        %384 = vmatpush.bf16.msra.mxu0 0
        %385 = vmatpush.bf16.msra.mxu0 %v376
        %386 = vmatmul.bf16.gmra.mxu0 %v373
        %v387 = vpop.f32.mrf.mxu0
        %v388 = vadd.f32 0.0, %v387
        %v389 = vpop.f32.mrf.mxu0
        %390 = vdwg.mxu0
        %391 = vrot.lane.b32.xlu0 %v311, 112
        %v392 = vpop.permute.xlu0 %391
        %393 = vrot.lane.b32.xlu0 %v316, 112
        %v394 = vpop.permute.xlu0 %393
        %v396 = vsel %vm241, %v392, 0
        %v399 = vsel %vm241, %v394, 0
        %401 = vmatpush.bf16.xpose.msra.mxu0 0
        %402 = vmatpush.bf16.xpose.msra.mxu0 0
        %403 = vmatpush.bf16.xpose.msra.mxu0 0
        %404 = vmatpush.bf16.xpose.msra.mxu0 0
        %405 = vmatpush.bf16.xpose.msra.mxu0 0
        %406 = vmatpush.bf16.xpose.msra.mxu0 0
        %407 = vmatpush.bf16.xpose.msra.mxu0 0
        %408 = vmatpush.bf16.xpose.msra.mxu0 %v399
        %409 = vmatmul.bf16.gmra.mxu0 %v396
        %v410 = vpop.f32.mrf.mxu0
        %v411 = vadd.f32 0.0, %v410
        %v412 = vpop.f32.mrf.mxu0
        %413 = vdwg.mxu0
        %v414 = vmul.f32 %v411, 0.35355338
        %v415 = vsel %vm240, -3.4028235e+38, %v414
        %v416 = vsel %vm241, %v415, -inf
        %417 = vmax.xlane.f32.xlu0 %v416
        %v418 = vpop.xlane.xlu0 %417
        %v419 = vsub.f32 %v415, %v418
        %v420 = vmul.f32 %v419, 1.442695
        %v421 = vpow.pop %v420
        %v422 = vsel %vm241, %v421, 0.0
        %423 = vadd.xlane.f32.xlu0 %v422
        %v424 = vpop.xlane.xlu0 %423
        %v425 = vrcp.pop %v424
        %v426 = vmul.f32 %v424, %v425
        %v427 = vsub.f32 1.0, %v426
        %v428 = vmul.f32 %v425, %v427
        %v429 = vadd.f32 %v425, %v428
        %vm430 = vweird.f32 %v424
        %vm431 = vweird.f32 %v425
        %vm432 = vmor %vm430, %vm431
        %v433 = vsel %vm432, %v425, %v429
        %v434 = vand.u32 2147483647, %v424
        %vm435 = vcmp.eq.f32.partialorder %v434, 8.507059e+37
        %v436 = vand.u32 %v424, 2147483648
        %v437 = vor.u32 1.1754944e-38, %v436
        %v438 = vsel %vm435, %v437, %v433
        %v439 = vmul.f32 %v421, %v438
        %s440 = scalar_lea.vmem %s221, 16 [#allocation3]
        %441 = vst.msk [vmem:[%s440] sm:$0xff] %vm241, %v439
        %v442 = vpack.c.bf16 %v439, %v439
        %443 = vrot.lane.b32.xlu0 %v369, 112
        %v444 = vpop.permute.xlu0 %443
        %v446 = vsel %vm241, %v442, 0
        %v449 = vsel %vm292, %v444, 0
        %451 = vmatpush.bf16.msra.mxu0 0
        %452 = vmatpush.bf16.msra.mxu0 0
        %453 = vmatpush.bf16.msra.mxu0 0
        %454 = vmatpush.bf16.msra.mxu0 0
        %455 = vmatpush.bf16.msra.mxu0 0
        %456 = vmatpush.bf16.msra.mxu0 0
        %457 = vmatpush.bf16.msra.mxu0 0
        %458 = vmatpush.bf16.msra.mxu0 %v449
        %459 = vmatmul.bf16.gmra.mxu0 %v446
        %v460 = vpop.f32.mrf.mxu0
        %v461 = vadd.f32 0.0, %v460
        %v462 = vpop.f32.mrf.mxu0
        %463 = vdwg.mxu0
        %464 = vrot.lane.b32.xlu0 %v311, 104
        %v465 = vpop.permute.xlu0 %464
        %466 = vrot.lane.b32.xlu0 %v316, 104
        %v467 = vpop.permute.xlu0 %466
        %v469 = vsel %vm241, %v465, 0
        %v472 = vsel %vm241, %v467, 0
        %474 = vmatpush.bf16.xpose.msra.mxu0 0
        %475 = vmatpush.bf16.xpose.msra.mxu0 0
        %476 = vmatpush.bf16.xpose.msra.mxu0 0
        %477 = vmatpush.bf16.xpose.msra.mxu0 0
        %478 = vmatpush.bf16.xpose.msra.mxu0 0
        %479 = vmatpush.bf16.xpose.msra.mxu0 0
        %480 = vmatpush.bf16.xpose.msra.mxu0 0
        %481 = vmatpush.bf16.xpose.msra.mxu0 %v472
        %482 = vmatmul.bf16.gmra.mxu0 %v469
        %v483 = vpop.f32.mrf.mxu0
        %v484 = vadd.f32 0.0, %v483
        %v485 = vpop.f32.mrf.mxu0
        %486 = vdwg.mxu0
        %v487 = vmul.f32 %v484, 0.35355338
        %v488 = vsel %vm240, -3.4028235e+38, %v487
        %v489 = vsel %vm241, %v488, -inf
        %490 = vmax.xlane.f32.xlu0 %v489
        %v491 = vpop.xlane.xlu0 %490
        %v492 = vsub.f32 %v488, %v491
        %v493 = vmul.f32 %v492, 1.442695
        %v494 = vpow.pop %v493
        %v495 = vsel %vm241, %v494, 0.0
        %496 = vadd.xlane.f32.xlu0 %v495
        %v497 = vpop.xlane.xlu0 %496
        %v498 = vrcp.pop %v497
        %v499 = vmul.f32 %v497, %v498
        %v500 = vsub.f32 1.0, %v499
        %v501 = vmul.f32 %v498, %v500
        %v502 = vadd.f32 %v498, %v501
        %vm503 = vweird.f32 %v497
        %vm504 = vweird.f32 %v498
        %vm505 = vmor %vm503, %vm504
        %v506 = vsel %vm505, %v498, %v502
        %v507 = vand.u32 2147483647, %v497
        %vm508 = vcmp.eq.f32.partialorder %v507, 8.507059e+37
        %v509 = vand.u32 %v497, 2147483648
        %v510 = vor.u32 1.1754944e-38, %v509
        %v511 = vsel %vm508, %v510, %v506
        %v512 = vmul.f32 %v494, %v511
        %s513 = scalar_lea.vmem %s221, 24 [#allocation3]
        %514 = vst.msk [vmem:[%s513] sm:$0xff] %vm241, %v512
        %v515 = vpack.c.bf16 %v512, %v512
        %516 = vrot.lane.b32.xlu0 %v369, 104
        %v517 = vpop.permute.xlu0 %516
        %v519 = vsel %vm241, %v515, 0
        %v522 = vsel %vm292, %v517, 0
        %524 = vmatpush.bf16.msra.mxu0 0
        %525 = vmatpush.bf16.msra.mxu0 0
        %526 = vmatpush.bf16.msra.mxu0 0
        %527 = vmatpush.bf16.msra.mxu0 0
        %528 = vmatpush.bf16.msra.mxu0 0
        %529 = vmatpush.bf16.msra.mxu0 0
        %530 = vmatpush.bf16.msra.mxu0 0
        %531 = vmatpush.bf16.msra.mxu0 %v522
        %532 = vmatmul.bf16.gmra.mxu0 %v519
        %v533 = vpop.f32.mrf.mxu0
        %v534 = vadd.f32 0.0, %v533
        %v535 = vpop.f32.mrf.mxu0
        %536 = vdwg.mxu0
        %538 = vrot.lane.b32.xlu0 %v388, 8
        %v539 = vpop.permute.xlu0 %538
        %542 = vrot.lane.b32.xlu0 %v461, 16
        %v543 = vpop.permute.xlu0 %542
        %546 = vrot.lane.b32.xlu0 %v534, 24
        %v547 = vpop.permute.xlu0 %546
        %v549 = vsel %vm241, %v306, %v539
        %vm550 = vcmask 130048
        %v551 = vsel %vm550, %v549, %v543
        %vm552 = vcmask 195584
        %v553 = vsel %vm552, %v551, %v547
        %v554 = vpack.c.bf16 %v553, %v553
        %vm555 = vcmask 257024
        %556 = vst.msk [vmem:[%s228] sm:$0xf] %vm555, %v554
        %p557 = scmp.lt.s32.totalorder %s21, 1
        %s558 = scalar_select %p557, %s21, 1
        %p559 = scmp.lt.s32.totalorder %s22, 0
        %s560 = scalar_select %p559, %s22, 0
        %s561 = sadd.s32 %s560, %s558
        %s562 = smul.addr %s561, 4
        %s563 = scalar_lea.vmem %s1, %s562
        %s564 = sand.u32 %s95, 1
        %s565 = scalar_lea.sflag [#allocation4], %s564
        %s566 = sand.u32 %s95, 1
        %s567 = smul.addr %s566, 32
        %s568 = scalar_lea.vmem [#allocation3], %s567
        // Predicated region
        $region66: #{self_attention_forward.4} parent=60 // pred_check
          %p569 = pneg %p77
        $region67: #{self_attention_forward.4} parent=60 // pred_check_branch
          %571 = sbr.rel (%p569) target = $region69
        $region68: #{self_attention_forward.4} parent=60 // pred_region
          _
        $region69: #{self_attention_forward.4} parent=60 // pred_fallthru
          _
        // Predicated region
        $region70: #{self_attention_forward.4} parent=60 // pred_check
          %p572 = pneg %p105
        $region71: #{self_attention_forward.4} parent=60 // pred_check_branch
          %574 = sbr.rel (%p572) target = $region73
        $region72: #{self_attention_forward.4} parent=60 // pred_region
          %s575 = smul.u32 4, %s22
          %577 = vsyncadd %s565, 0
          %s578 = smul.addr %s21, 4
          %s579 = sadd.s32 %s575, %s578
          %s580 = smul.addr %s579, 8
          %s581 = scalar_lea.hbm %s2, %s580
          %s582 = sshll.u32 %s568, 4
          %s583 = int_to_ptr.vmem [resolvable:$true] %s582
          %s584 = sshll.u32 %s581, 4
          %s585 = int_to_ptr.hbm [resolvable:$true] %s584
          %590 = dma.vmem_to_hbm [thread:$0]  %s583, 512, %s585, %s565, 128, 128, 8
        $region73: #{self_attention_forward.4} parent=60 // pred_fallthru
          _
      $region61: #{self_attention_forward.4} parent=5 // pred_fallthru
        _
      %p591 = scmp.le.s32.totalorder 2, %s12
      // Predicated region
      $region74: #{self_attention_forward.4} parent=5 // pred_check
        %p592 = pneg %p591
      $region75: #{self_attention_forward.4} parent=5 // pred_check_branch
        %594 = sbr.rel (%p592) target = $region77
      $region76: #{self_attention_forward.4} parent=5 // pred_region
        %s595 = ssub.s32 %s12, 2
        // Predicated region
        $region78: #{self_attention_forward.4} parent=76 // pred_check
          %p596 = pneg %p83
        $region79: #{self_attention_forward.4} parent=76 // pred_check_branch
          %598 = sbr.rel (%p596) target = $region81
        $region80: #{self_attention_forward.4} parent=76 // pred_region
          %p599 = scmp.lt.s32.totalorder %s23, 1
          %s600 = scalar_select %p599, %s23, 1
          %p601 = scmp.lt.s32.totalorder %s24, 0
          %s602 = scalar_select %p601, %s24, 0
          %s603 = sadd.s32 %s602, %s600
          %s604 = smul.addr %s603, 4
          %s605 = scalar_lea.vmem %s1, %s604
        $region81: #{self_attention_forward.4} parent=76 // pred_fallthru
          _
        // Predicated region
        $region82: #{self_attention_forward.4} parent=76 // pred_check
          %p606 = pneg %p111
        $region83: #{self_attention_forward.4} parent=76 // pred_check_branch
          %608 = sbr.rel (%p606) target = $region85
        $region84: #{self_attention_forward.4} parent=76 // pred_region
          %s609 = sand.u32 %s96, 1
          %s610 = scalar_lea.sflag [#allocation4], %s609
          %s611 = sand.u32 %s96, 1
          %s612 = smul.addr %s611, 32
          %s613 = scalar_lea.vmem [#allocation3], %s612
          %615 = dma.done %s610, 512
        $region85: #{self_attention_forward.4} parent=76 // pred_fallthru
          _
      $region77: #{self_attention_forward.4} parent=5 // pred_fallthru
        _
    $region6: #{self_attention_forward.4} parent=1 // loop_footer
      %s16 = sadd.s32 1, %s12
    $region7: #{self_attention_forward.4} parent=1 // loop_footer_branch
      %11 = sbr.rel target = $region3
    $region8: #{self_attention_forward.4} parent=1 // loop_exit
      _
    %616 = vsyncpa [#allocation4], 1
    %s617 = scalar_lea.sflag [#allocation4], 1
    %618 = vsyncpa %s617, 1

</llo_original>
